<compile_context>
chip_gen: v5e
topology: v5e:2x2
jax: 0.10.0
libtpu: 0.0.40
codegen_flags: <defaults>
</compile_context>

<pallas_src>
import jax
import jax.numpy as jnp
from jax import lax
from jax.experimental import pallas as pl
from jax.experimental.pallas import tpu as pltpu

LANES = 512                              # lane-dense last dim (multiple of 128)
_EPS = 1e-7
_TARGET_BLOCK_BYTES = 2 * 1024 * 1024    # both inputs combined, per grid step


def _cdiv(a, b):
    return -(-a // b)


def _pointwise(t, o):
    """(t - o)^2 / (t^2 + 1e-7) in f32; divide via EUP approx reciprocal."""
    t = t.astype(jnp.float32)
    o = o.astype(jnp.float32)
    d = t - o
    return (d * d) * pl.reciprocal(t * t + jnp.float32(_EPS), approx=True)


# ---------------------- small inputs: one block, one step ----------------------

def _guiyi_single_kernel(t_ref, o_ref, sum_ref):
    sum_ref[0, 0] = jnp.sum(_pointwise(t_ref[...], o_ref[...]))


def _run_single(t2, o2):
    rows = t2.shape[0]
    out = pl.pallas_call(
        _guiyi_single_kernel,
        out_shape=jax.ShapeDtypeStruct((1, 1), jnp.float32),
        grid_spec=pltpu.PrefetchScalarGridSpec(
            num_scalar_prefetch=0,
            grid=(1,),
            in_specs=[
                pl.BlockSpec((rows, LANES), lambda i: (0, 0)),
                pl.BlockSpec((rows, LANES), lambda i: (0, 0)),
            ],
            out_specs=pl.BlockSpec(memory_space=pltpu.MemorySpace.SMEM),
        ),
        compiler_params=pltpu.CompilerParams(dimension_semantics=("arbitrary",)),
    )(t2, o2)
    return out[0, 0]


# ------------------- large inputs: tiled, 2-way core parallel ------------------

def _make_tiled_kernel(rows, block_rows, half_blocks):
    exact = (2 * half_blocks * block_rows == rows)   # grid covers rows exactly
    num_sub = block_rows // 8

    def kernel(t_ref, o_ref, out_ref):
        p = pl.program_id(0)
        i = pl.program_id(1)

        @pl.when(i == 0)
        def _init():
            out_ref[...] = jnp.zeros_like(out_ref)

        val = _pointwise(t_ref[...], o_ref[...])      # (block_rows, LANES) f32

        def fold(v):                                  # -> (8, LANES); VALU-only adds
            return jnp.sum(v.reshape(num_sub, 8, LANES), axis=0)

        if exact:
            out_ref[...] += fold(val)
        else:
            row0 = (p * half_blocks + i) * block_rows  # un-clamped block start

            @pl.when(row0 + block_rows <= rows)        # fully in-bounds block
            def _full():
                out_ref[...] += fold(val)

            @pl.when(row0 + block_rows > rows)         # boundary / overflow block
            def _edge():
                ridx = row0 + lax.broadcasted_iota(jnp.int32, val.shape, 0)
                out_ref[...] += fold(jnp.where(ridx < rows, val, jnp.float32(0.0)))

    return kernel


def _run_tiled(t2, o2, block_rows):
    rows = t2.shape[0]
    nblocks = _cdiv(rows, block_rows)
    half_blocks = _cdiv(nblocks, 2)

    # Clamp the row-block index so no DMA is ever issued fully out of bounds;
    # the kernel masks any step whose (un-clamped) start is past `rows` to zero.
    def in_map(p, i):
        return (jnp.minimum(p * half_blocks + i, nblocks - 1), 0)

    partials = pl.pallas_call(
        _make_tiled_kernel(rows, block_rows, half_blocks),
        out_shape=jax.ShapeDtypeStruct((2 * 8, LANES), jnp.float32),
        grid_spec=pltpu.PrefetchScalarGridSpec(
            num_scalar_prefetch=0,
            grid=(2, half_blocks),
            in_specs=[
                pl.BlockSpec((block_rows, LANES), in_map),
                pl.BlockSpec((block_rows, LANES), in_map),
            ],
            out_specs=pl.BlockSpec((8, LANES), lambda p, i: (p, 0)),
        ),
        compiler_params=pltpu.CompilerParams(
            dimension_semantics=("parallel", "arbitrary"),
        ),
    )(t2, o2)
    return jnp.sum(partials)


# ----------------------------------- wrapper -----------------------------------

def guiyi_loss(output: jnp.ndarray, target: jnp.ndarray) -> jnp.ndarray:
    """output/target: same-shape arrays. Returns scalar f32 loss."""
    assert output.shape == target.shape
    t = target.reshape(-1)
    o = output.reshape(-1)
    n = t.shape[0]
    rows = n // LANES
    n_main = rows * LANES

    # Ragged lane tail (< LANES elements): plain jnp, negligible.
    tail_sum = None
    if n_main < n:
        tt = t[n_main:].astype(jnp.float32)
        to = o[n_main:].astype(jnp.float32)
        dd = tt - to
        tail_sum = jnp.sum(dd * dd / (tt * tt + _EPS))

    if rows == 0:
        main_sum = jnp.zeros((), jnp.float32)
    else:
        t2 = (t if n_main == n else t[:n_main]).reshape(rows, LANES)
        o2 = (o if n_main == n else o[:n_main]).reshape(rows, LANES)
        bytes_per_row = LANES * (t2.dtype.itemsize + o2.dtype.itemsize)
        block_rows = max(32, min(4096, (_TARGET_BLOCK_BYTES // bytes_per_row) // 32 * 32))
        if rows <= block_rows:
            main_sum = _run_single(t2, o2)
        else:
            main_sum = _run_tiled(t2, o2, block_rows)

    total = main_sum if tail_sum is None else main_sum + tail_sum
    # Match torch's sequential `/ 320 / 2 / 240`.
    return total / 320.0 / 2.0 / 240.0


def _reference_loss(output, target):
    """Pure-JAX mirror of the PyTorch forward (for correctness checks)."""
    t = target.astype(jnp.float32)
    o = output.astype(jnp.float32)
    return jnp.sum((t - o) ** 2 / (t ** 2 + _EPS)) / 320 / 2 / 240


if __name__ == "__main__":
    key = jax.random.PRNGKey(0)
    cases = [
        ((2, 4, 16, 16), jnp.float32),    # small: single-block path
        ((2500, 512), jnp.float32),       # tiled dual-core path with ragged last block
        ((1000, 300), jnp.float32),       # tiled path + lane tail handled in the wrapper
        ((2, 4, 16, 16), jnp.bfloat16),   # in-kernel upcast path
    ]
    for idx, (shape, dtype) in enumerate(cases):
        k1, k2 = jax.random.split(jax.random.fold_in(key, idx))
        target = jax.random.normal(k1, shape, dtype=jnp.float32)
        output = target + 0.1 * jax.random.normal(k2, shape, dtype=jnp.float32)
        target = target.astype(dtype)
        output = output.astype(dtype)

        loss = jax.block_until_ready(guiyi_loss(output, target))
        ref = _reference_loss(output, target)
        if not jnp.allclose(loss, ref, rtol=1.5e-3, atol=1e-8):
            raise AssertionError(
                f"mismatch for shape={shape} dtype={dtype}: pallas={loss} ref={ref}")
    print("KERNEL_OK")
</pallas_src>

<mosaic_0001>
module attributes {stable_mosaic.version = 11 : i64} {
  func.func @_guiyi_single_kernel(%arg0: i32, %arg1: memref<4x512xf32, #tpu.memory_space<vmem>>, %arg2: memref<4x512xf32, #tpu.memory_space<vmem>>, %arg3: memref<1x1xf32, #tpu.memory_space<smem>>) attributes {dimension_semantics = [#tpu.dimension_semantics<arbitrary>], iteration_bounds = array<i64: 1>, scalar_prefetch = 0 : i64, scratch_operands = 0 : i64, tpu.core_type = #tpu.core_type<tc>, window_params = [{pipeline_mode = #tpu.pipeline_mode<synchronous>, transform_indices = @transform_0, window_bounds = array<i64: 4, 512>}, {pipeline_mode = #tpu.pipeline_mode<synchronous>, transform_indices = @transform_1, window_bounds = array<i64: 4, 512>}, {transform_indices = @transform_2, window_bounds = array<i64: 1, 1>}]} {
    %c0 = arith.constant 0 : index
    %c0_0 = arith.constant 0 : index
    %0 = vector.load %arg1[%c0, %c0_0] : memref<4x512xf32, #tpu.memory_space<vmem>>, vector<4x512xf32>
    %c0_1 = arith.constant 0 : index
    %c0_2 = arith.constant 0 : index
    %1 = vector.load %arg2[%c0_1, %c0_2] : memref<4x512xf32, #tpu.memory_space<vmem>>, vector<4x512xf32>
    %2 = arith.subf %0, %1 : vector<4x512xf32>
    %3 = arith.mulf %2, %2 : vector<4x512xf32>
    %4 = arith.mulf %0, %0 : vector<4x512xf32>
    %cst = arith.constant 1.000000e-07 : f32
    %5 = vector.broadcast %cst : f32 to vector<4x512xf32>
    %6 = arith.addf %4, %5 : vector<4x512xf32>
    %7 = tpu.reciprocal %6 {approx = true} : vector<4x512xf32> -> vector<4x512xf32>
    %8 = arith.mulf %3, %7 : vector<4x512xf32>
    %9 = vector.shape_cast %8 : vector<4x512xf32> to vector<1x4x512xf32>
    %cst_3 = arith.constant dense<0.000000e+00> : vector<1xf32>
    %10 = vector.multi_reduction <add>, %9, %cst_3 [1, 2] : vector<1x4x512xf32> to vector<1xf32>
    %11 = vector.shape_cast %10 : vector<1xf32> to vector<1x1x1xf32>
    %12 = vector.extract %11[0, 0, 0] : f32 from vector<1x1x1xf32>
    %c0_4 = arith.constant 0 : index
    %c0_5 = arith.constant 0 : index
    %13 = memref.load %arg3[%c0_4, %c0_5] : memref<1x1xf32, #tpu.memory_space<smem>>
    memref.store %12, %arg3[%c0_4, %c0_5] : memref<1x1xf32, #tpu.memory_space<smem>>
    return
  }
  func.func @transform_0(%arg0: i32) -> (i32, i32) {
    %c0_i32 = arith.constant 0 : i32
    %c0_i32_0 = arith.constant 0 : i32
    %c0_i32_1 = arith.constant 0 : i32
    return %c0_i32, %c0_i32_0 : i32, i32
  }
  func.func @transform_1(%arg0: i32) -> (i32, i32) {
    %c0_i32 = arith.constant 0 : i32
    %c0_i32_0 = arith.constant 0 : i32
    %c0_i32_1 = arith.constant 0 : i32
    return %c0_i32, %c0_i32_0 : i32, i32
  }
  func.func @transform_2(%arg0: i32) -> (i32, i32) {
    %c0_i32 = arith.constant 0 : i32
    %c0_i32_0 = arith.constant 0 : i32
    %c0_i32_1 = arith.constant 0 : i32
    return %c0_i32, %c0_i32_0 : i32, i32
  }
}

</mosaic_0001>

<llo_original>
// kernel: tpu_custom_call.1
$region0: #{tpu_custom_call.1}
  #allocation0 [shape = 'u32[]', space=smem, size = 0x4, offset = 0x4, fixed_abs, tag = 'smem constant byte address 0x4 - core index']
  #allocation1 [shape = 'u32[72,128]{1,0:T(1,128)}', space=vmem, size = 0x9000, scoped, tag = 'internal scratch']
  %s0 = inlined_call_operand.hbm [shape: f32[4,512], index: 0, kind: input, shape index: {}]
  %s1 = inlined_call_operand.hbm [shape: f32[4,512], index: 1, kind: input, shape index: {}]
  %s2 = inlined_call_operand.hbm [shape: f32[1,1], index: 2, kind: output, shape index: {}]
  %s3 = sld [smem:[#allocation0]]
  $region26: #{tpu_custom_call.1} parent=0
    _
  %s5 = ssub.s32 1, %s3
  %s6 = scalar_select 0, %s5, %s3
  $region1: #{tpu_custom_call.1} parent=0
    #allocation2 [shape = 'u8[8192]{0}', space=vmem, size = 0x2000, scoped, tag = 'input window, operand 0, single buffered']
    #allocation3 [shape = 's32[1]{0}', space=sflag, size = 0x4, scoped, tag = 'scoped memory for tpu_custom_call.1']
    #allocation4 [shape = 's32[1]{0}', space=sflag, size = 0x4, scoped, tag = 'scoped memory for tpu_custom_call.1']
    #allocation5 [shape = 'u8[8192]{0}', space=vmem, size = 0x2000, scoped, tag = 'input window, operand 1, single buffered']
    #allocation6 [shape = 's32[1]{0}', space=sflag, size = 0x4, scoped, tag = 'scoped memory for tpu_custom_call.1']
    #allocation7 [shape = 'u8[512]{0}', space=smem, size = 0x200, scoped, tag = 'output window, operand 0, single buffered']
    %7 = vsyncpa [#allocation3], 0
    %8 = vsyncpa [#allocation6], 0
    %9 = vsyncpa [#allocation4], 0
    // Predicated region
    $region2: #{tpu_custom_call.1} parent=1 // pred_check
      _
    $region3: #{tpu_custom_call.1} parent=1 // pred_check_branch
      %11 = sbr.rel (0) target = $region5
    $region4: #{tpu_custom_call.1} parent=1 // pred_region
      %13 = vsyncadd [#allocation3], 0
      %s15 = sshll.u32 %s0, 4
      %s16 = int_to_ptr.hbm [resolvable:$true] %s15
      %s17 = sshll.u32 [#allocation2], 4
      %s18 = int_to_ptr.vmem [resolvable:$true] %s17
      %20 = dma.hbm_to_vmem [thread:$0]  %s16, 256, %s18, [#allocation3]
    $region5: #{tpu_custom_call.1} parent=1 // pred_fallthru
      _
    // Predicated region
    $region6: #{tpu_custom_call.1} parent=1 // pred_check
      _
    $region7: #{tpu_custom_call.1} parent=1 // pred_check_branch
      %22 = sbr.rel (0) target = $region9
    $region8: #{tpu_custom_call.1} parent=1 // pred_region
      %24 = vsyncadd [#allocation6], 0
      %s26 = sshll.u32 %s1, 4
      %s27 = int_to_ptr.hbm [resolvable:$true] %s26
      %s28 = sshll.u32 [#allocation5], 4
      %s29 = int_to_ptr.vmem [resolvable:$true] %s28
      %31 = dma.hbm_to_vmem [thread:$0]  %s27, 256, %s29, [#allocation6]
    $region9: #{tpu_custom_call.1} parent=1 // pred_fallthru
      _
    // Predicated region
    $region10: #{tpu_custom_call.1} parent=1 // pred_check
      _
    $region11: #{tpu_custom_call.1} parent=1 // pred_check_branch
      %33 = sbr.rel (0) target = $region13
    $region12: #{tpu_custom_call.1} parent=1 // pred_region
      %35 = dma.done [#allocation3], 256
    $region13: #{tpu_custom_call.1} parent=1 // pred_fallthru
      _
    // Predicated region
    $region14: #{tpu_custom_call.1} parent=1 // pred_check
      _
    $region15: #{tpu_custom_call.1} parent=1 // pred_check_branch
      %37 = sbr.rel (0) target = $region17
    $region16: #{tpu_custom_call.1} parent=1 // pred_region
      %39 = dma.done [#allocation6], 256
    $region17: #{tpu_custom_call.1} parent=1 // pred_fallthru
      _
    %v40 = vld [vmem:[#allocation2] sm:$0xff]
    %v41 = vld [vmem:[#allocation2 + $0x8] sm:$0xff]
    %v42 = vld [vmem:[#allocation5] sm:$0xff]
    %v43 = vld [vmem:[#allocation5 + $0x8] sm:$0xff]
    %v44 = vsub.f32 %v40, %v42
    %v45 = vsub.f32 %v41, %v43
    %v46 = vmul.f32 %v44, %v44
    %v47 = vmul.f32 %v45, %v45
    %v48 = vmul.f32 %v40, %v40
    %v49 = vmul.f32 %v41, %v41
    %v50 = vadd.f32 %v48, 1e-07
    %v51 = vadd.f32 %v49, 1e-07
    %v52 = vrcp.pop %v50
    %v53 = vrcp.pop %v51
    %v54 = vmul.f32 %v46, %v52
    %v55 = vmul.f32 %v47, %v53
    %58 = vst [vmem:[#allocation1] ss:$2 sm:$0xff] %v54
    %s59 = scalar_lea.vmem [#allocation1], 16
    %60 = vst [vmem:[%s59] ss:$2 sm:$0xff] %v55
    %v61 = vld.sshfl [vmem:[#allocation1] sm:$0xff pattern:$0x75316420]
    %v62 = vld.sshfl [vmem:[#allocation1 + $0x8] sm:$0xff pattern:$0x75316420]
    %v63 = vld.sshfl [vmem:[#allocation1 + $0x10] sm:$0xff pattern:$0x75316420]
    %v64 = vld.sshfl [vmem:[#allocation1 + $0x18] sm:$0xff pattern:$0x75316420]
    %vm69 = vcmask 1043456
    %v70 = vsel %vm69, %v61, 0.0
    %v71 = vsel %vm69, %v62, 0.0
    %v72 = vadd.f32 %v70, %v71
    %v73 = vsel %vm69, %v63, 0.0
    %v74 = vadd.f32 %v72, %v73
    %v75 = vsel %vm69, %v64, 0.0
    %v76 = vadd.f32 %v74, %v75
    %77 = vadd.xlane.f32.xlu0 %v76
    %v78 = vpop.xlane.xlu0 %77
    %v79 = vrot.slane %v78, 4
    %v80 = vadd.f32 %v78, %v79
    %v81 = vrot.slane %v80, 2
    %v82 = vadd.f32 %v80, %v81
    %v83 = vrot.slane %v82, 1
    %v84 = vadd.f32 %v82, %v83
    %s85 = vtos %v84
    %s86 = scalar_lea.smem [#allocation7], 0
    %87 = sst [smem:[%s86]] %s85
    // Predicated region
    $region18: #{tpu_custom_call.1} parent=1 // pred_check
      _
    $region19: #{tpu_custom_call.1} parent=1 // pred_check_branch
      %89 = sbr.rel (0) target = $region21
    $region20: #{tpu_custom_call.1} parent=1 // pred_region
      %91 = vsyncadd [#allocation4], 0
      %s93 = sshll.u32 %s2, 4
      %s94 = int_to_ptr.hbm [resolvable:$true] %s93
      %96 = dma.smem_to_hbm [#allocation7], 16, %s94, [#allocation4]
    $region21: #{tpu_custom_call.1} parent=1 // pred_fallthru
      _
    // Predicated region
    $region22: #{tpu_custom_call.1} parent=1 // pred_check
      _
    $region23: #{tpu_custom_call.1} parent=1 // pred_check_branch
      %98 = sbr.rel (0) target = $region25
    $region24: #{tpu_custom_call.1} parent=1 // pred_region
      %100 = dma.done [#allocation4], 16
    $region25: #{tpu_custom_call.1} parent=1 // pred_fallthru
      _
    %101 = sfence
    %102 = vsyncpa [#allocation3], 1
    %103 = vsyncpa [#allocation6], 1
    %104 = vsyncpa [#allocation4], 1

</llo_original>
